<compile_context>
chip_gen: v5e
topology: v5e:2x2
jax: 0.10.0
libtpu: 0.0.40
codegen_flags: <defaults>
</compile_context>

<pallas_src>
import jax
import jax.numpy as jnp
import numpy as np
from jax import lax
from jax.experimental import pallas as pl
from jax.experimental.pallas import tpu as pltpu

# LIF parameters from SNNMnist.__init__
DT = 0.001
TAU_SYN_INV = 1.0 / 0.01   # 100.0
TAU_MEM_INV = 1.0 / 0.02   # 50.0
V_LEAK = 0.0
V_TH = 0.5
V_RESET = 0.0


def _round_up(x, m):
    return ((x + m - 1) // m) * m


def _pick_time_chunk(t, max_chunk):
    """Split T into n = cdiv(T, max_chunk) near-equal chunks.

    Returns (T_c, T_pad) with T_pad = T_c * n >= T (at most T_c - 1 padded
    steps, which the kernel masks out of the spike sum).  Keeps the per-grid
    step overhead amortised even for prime/awkward T.
    """
    n_chunks = -(-t // max_chunk)
    t_c = -(-t // n_chunks)
    return t_c, t_c * n_chunks


def _make_kernel(t_chunk, t_real, t_pad, inv_t, matmul_dtype):
    needs_mask = (t_pad != t_real)          # static Python bool
    mem_a = float(DT * TAU_MEM_INV)         # 0.05
    mem_decay = float(1.0 - DT * TAU_MEM_INV)   # 0.95
    syn_decay = float(1.0 - DT * TAU_SYN_INV)   # 0.90

    def snn_kernel(xw_ref, w_rec_ref, w_ro_ref, out_ref,
                   z_sc, v_sc, i_sc, sz_sc):
        c = pl.program_id(1)                # time-chunk index (innermost axis)
        n_c = pl.num_programs(1)

        @pl.when(c == 0)
        def _init():
            # Reset state at the start of each batch block's time sweep.
            z_sc[...] = jnp.zeros_like(z_sc)
            v_sc[...] = jnp.zeros_like(v_sc)      # V_LEAK == 0
            i_sc[...] = jnp.zeros_like(i_sc)
            sz_sc[...] = jnp.zeros_like(sz_sc)

        # Hoist the recurrent weight load out of the unrolled time loop.
        w_rec = w_rec_ref[...]

        def step(tt, carry):
            z, v, i = carry
            # Recurrent matmul uses the PREVIOUS step's spikes (z).
            rec = jnp.dot(z, w_rec, preferred_element_type=jnp.float32)
            # Folded LIF update (algebraically == norse lif_step, v_leak=0).
            v_dec = mem_decay * v + mem_a * i
            i_dec = syn_decay * i
            spike = v_dec > V_TH
            v_new = jnp.where(spike, jnp.float32(V_RESET), v_dec)
            z_new = spike.astype(matmul_dtype)
            i_new = i_dec + xw_ref[tt] + rec
            # sum_z accumulated via VMEM scratch (not a loop carry) to relieve
            # vreg pressure in the unrolled loop.
            z_f = spike.astype(jnp.float32)
            if needs_mask:
                valid = ((c * t_chunk + tt) < t_real).astype(jnp.float32)
                z_f = z_f * valid
            sz_sc[...] = sz_sc[...] + z_f
            return z_new, v_new, i_new

        carry0 = (z_sc[...], v_sc[...], i_sc[...])
        z, v, i = lax.fori_loop(0, t_chunk, step, carry0, unroll=True)

        # Spill state to VMEM only at the chunk boundary.
        z_sc[...] = z
        v_sc[...] = v
        i_sc[...] = i

        @pl.when(c == n_c - 1)
        def _finalize():
            # Hoisted linear readout: sum_z @ w_ro.T scaled by 1/T.
            sz = sz_sc[...].astype(matmul_dtype)
            out_ref[...] = (
                jnp.dot(sz, w_ro_ref[...], preferred_element_type=jnp.float32)
                * jnp.float32(inv_t))

    return snn_kernel


def snn_mnist_forward(x, w_in, w_rec, w_ro, b_ro, *,
                      matmul_dtype=jnp.bfloat16, max_chunk=8):
    """x: (T, B, N_in); w_in: (H, N_in); w_rec: (H, H); w_ro: (L, H); b_ro: (L,)."""
    x = jnp.asarray(x, jnp.float32)
    w_in = jnp.asarray(w_in, jnp.float32)
    w_rec = jnp.asarray(w_rec, jnp.float32)
    w_ro = jnp.asarray(w_ro, jnp.float32)
    b_ro = jnp.asarray(b_ro, jnp.float32)

    T, B, N_in = x.shape
    H = w_in.shape[0]
    L = w_ro.shape[0]
    md = jnp.dtype(matmul_dtype)

    # ---- tile selection ------------------------------------------------------
    B_p = _round_up(B, 8)
    if B_p <= 128:
        B_blk = B_p
    else:
        B_p = _round_up(B_p, 128)
        # 256-wide batch blocks fill the 256-wide MXUs on v6e/v7x, but keep at
        # least two blocks alive so v7x's two TensorCores both get work.
        if B_p % 256 == 0 and B_p >= 512:
            B_blk = 256
        else:
            B_blk = 128
    n_b = B_p // B_blk

    H_p = _round_up(H, 128)
    L_p = _round_up(L, 128)

    T_c, T_pad = _pick_time_chunk(T, max_chunk)
    n_c = T_pad // T_c

    # ---- input projection hoisted out of the serial kernel -------------------
    # One big (T*B, N) @ (N, H) matmul at full MXU utilisation; the recurrent
    # kernel then streams only the (narrower) H-wide activations.
    xw = jnp.einsum(
        "tbn,hn->tbh", x.astype(md), w_in.astype(md),
        precision=jax.lax.Precision.HIGHEST,
        preferred_element_type=jnp.float32)
    xw_pad = jnp.zeros((T_pad, B_p, H_p), jnp.float32).at[:T, :B, :H].set(xw)

    # Zero padding is exact: padded hidden units have zero input/recurrent
    # weights so they never cross the 0.5 threshold; padded batch rows stay 0;
    # padded time steps are masked out of sum_z inside the kernel.
    w_rec_t = jnp.zeros((H_p, H_p), md).at[:H, :H].set(w_rec.T.astype(md))
    w_ro_t = jnp.zeros((H_p, L_p), md).at[:H, :L].set(w_ro.T.astype(md))

    kernel = _make_kernel(T_c, T, T_pad, 1.0 / T, md)

    # ---- explicit VMEM budget (v5e scoped default is only 16 MiB) ------------
    est = (2 * T_c * B_blk * H_p * 4                      # xw blocks (dbl buf)
           + 2 * (H_p * H_p + H_p * L_p) * md.itemsize    # weights (dbl buf)
           + 2 * B_blk * L_p * 4                          # out block
           + B_blk * H_p * (3 * 4 + md.itemsize))         # state scratch
    vmem_limit = int(min(max(2 * est + (8 << 20), 32 << 20), 64 << 20))

    out_pad = pl.pallas_call(
        kernel,
        out_shape=jax.ShapeDtypeStruct((B_p, L_p), jnp.float32),
        grid_spec=pltpu.PrefetchScalarGridSpec(
            num_scalar_prefetch=0,
            grid=(n_b, n_c),
            in_specs=[
                pl.BlockSpec((T_c, B_blk, H_p), lambda b, c: (c, b, 0)),
                pl.BlockSpec((H_p, H_p), lambda b, c: (0, 0)),
                pl.BlockSpec((H_p, L_p), lambda b, c: (0, 0)),
            ],
            out_specs=pl.BlockSpec((B_blk, L_p), lambda b, c: (b, 0)),
            scratch_shapes=[
                pltpu.VMEM((B_blk, H_p), md),            # z (previous spikes)
                pltpu.VMEM((B_blk, H_p), jnp.float32),   # v (membrane)
                pltpu.VMEM((B_blk, H_p), jnp.float32),   # i (synaptic current)
                pltpu.VMEM((B_blk, H_p), jnp.float32),   # sum_t z_t
            ],
        ),
        compiler_params=pltpu.CompilerParams(
            # batch blocks independent (megacore-splittable); time chunks carry
            # state -> arbitrary, placed last.
            dimension_semantics=("parallel", "arbitrary"),
            vmem_limit_bytes=vmem_limit),
    )(xw_pad, w_rec_t, w_ro_t)

    # Bias applied once (per-step bias summed then divided by T == b_ro).
    out = out_pad[:B, :L] + b_ro[None, :]
    return out, 0.01


def snn_mnist_reference(x, w_in, w_rec, w_ro, b_ro, *, matmul_dtype=jnp.float32):
    """Pure-JAX step-by-step reference of the same forward pass.

    Uses the same (algebraically identical) folded LIF constants as the kernel
    so the f32 comparison is not perturbed by rounding-order differences.
    """
    T, B, N_in = x.shape
    H = w_in.shape[0]
    L = w_ro.shape[0]
    hi = jax.lax.Precision.HIGHEST
    md = jnp.dtype(matmul_dtype)
    w_in_m = w_in.astype(md)
    w_rec_m = w_rec.astype(md)
    w_ro_m = w_ro.astype(md)

    z = jnp.zeros((B, H), jnp.float32)
    v = jnp.zeros((B, H), jnp.float32)
    i = jnp.zeros((B, H), jnp.float32)
    outputs = jnp.zeros((B, L), jnp.float32)
    a = DT * TAU_MEM_INV
    for t in range(T):
        v_dec = (1.0 - a) * v + a * i            # == v + a*((V_LEAK - v) + i)
        i_dec = (1.0 - DT * TAU_SYN_INV) * i
        spike = v_dec > V_TH
        z_new = spike.astype(jnp.float32)
        v = jnp.where(spike, V_RESET, v_dec)
        i = (i_dec
             + jnp.dot(x[t].astype(md), w_in_m.T, precision=hi,
                       preferred_element_type=jnp.float32)
             + jnp.dot(z.astype(md), w_rec_m.T, precision=hi,
                       preferred_element_type=jnp.float32))
        z = z_new
        outputs = outputs + (
            jnp.dot(z_new.astype(md), w_ro_m.T, precision=hi,
                    preferred_element_type=jnp.float32) + b_ro)
    return outputs / T


if __name__ == "__main__":
    # Small shapes consistent with the forward: (time_window, batch, num_neurons)
    T, B, N_in, H, L = 8, 2, 16, 32, 10

    key = jax.random.PRNGKey(0)
    k_x, k_wi, k_wr, k_wo, k_bo = jax.random.split(key, 5)

    # Poisson-encoded (binary spike) input, as the PoissonEncoder would produce.
    x = jax.random.bernoulli(k_x, p=0.3, shape=(T, B, N_in)).astype(jnp.float32)

    # Deterministic synthetic parameters (shapes from the module's __init__).
    w_in = jax.random.normal(k_wi, (H, N_in), jnp.float32) * jnp.sqrt(2.0 / H)
    w_rec = jax.random.normal(k_wr, (H, H), jnp.float32) * jnp.sqrt(2.0 / H)
    w_ro = jax.random.normal(k_wo, (L, H), jnp.float32) * (1.0 / jnp.sqrt(H))
    b_ro = jax.random.normal(k_bo, (L,), jnp.float32) * 0.01

    # Exact f32 path: must match the f32 reference tightly.
    out_f32, _ = snn_mnist_forward(x, w_in, w_rec, w_ro, b_ro,
                                   matmul_dtype=jnp.float32)
    out_f32 = jax.block_until_ready(out_f32)
    ref_f32 = snn_mnist_reference(x, w_in, w_rec, w_ro, b_ro,
                                  matmul_dtype=jnp.float32)
    np.testing.assert_allclose(np.asarray(out_f32), np.asarray(ref_f32),
                               rtol=1e-4, atol=1e-4)

    # Default fast path (bf16 matmuls).  Weight rounding can flip marginal
    # threshold crossings, so (per the perf review) only a sanity check is
    # appropriate here — the f32 path above establishes exact correctness.
    out_bf16, _ = snn_mnist_forward(x, w_in, w_rec, w_ro, b_ro)
    out_bf16 = jax.block_until_ready(out_bf16)
    assert out_bf16.shape == (B, L)
    assert np.all(np.isfinite(np.asarray(out_bf16)))

    print("KERNEL_OK")
</pallas_src>

<mosaic_0001>
module attributes {stable_mosaic.version = 11 : i64} {
  func.func @snn_kernel(%arg0: i32, %arg1: i32, %arg2: memref<8x8x128xf32, #tpu.memory_space<vmem>>, %arg3: memref<128x128xf32, #tpu.memory_space<vmem>>, %arg4: memref<128x128xf32, #tpu.memory_space<vmem>>, %arg5: memref<8x128xf32, #tpu.memory_space<vmem>>, %arg6: memref<8x128xf32, #tpu.memory_space<vmem>>, %arg7: memref<8x128xf32, #tpu.memory_space<vmem>>, %arg8: memref<8x128xf32, #tpu.memory_space<vmem>>, %arg9: memref<8x128xf32, #tpu.memory_space<vmem>>) attributes {dimension_semantics = [#tpu.dimension_semantics<parallel>, #tpu.dimension_semantics<arbitrary>], iteration_bounds = array<i64: 1, 1>, scalar_prefetch = 0 : i64, scratch_operands = 4 : i64, tpu.core_type = #tpu.core_type<tc>, window_params = [{transform_indices = @transform_0, window_bounds = array<i64: 8, 8, 128>}, {pipeline_mode = #tpu.pipeline_mode<synchronous>, transform_indices = @transform_1, window_bounds = array<i64: 128, 128>}, {pipeline_mode = #tpu.pipeline_mode<synchronous>, transform_indices = @transform_2, window_bounds = array<i64: 128, 128>}, {transform_indices = @transform_3, window_bounds = array<i64: 8, 128>}]} {
    %c0_i32 = arith.constant 0 : i32
    %0 = arith.cmpi eq, %arg1, %c0_i32 : i32
    %1 = arith.extui %0 : i1 to i32
    %c0_i32_0 = arith.constant 0 : i32
    %2 = arith.cmpi ne, %1, %c0_i32_0 : i32
    scf.if %2 {
      %cst_112 = arith.constant 0.000000e+00 : f32
      %205 = vector.broadcast %cst_112 : f32 to vector<8x128xf32>
      %c0_113 = arith.constant 0 : index
      %c0_114 = arith.constant 0 : index
      %206 = vector.load %arg6[%c0_113, %c0_114] : memref<8x128xf32, #tpu.memory_space<vmem>>, vector<8x128xf32>
      tpu.vector_store %arg6[%c0_113, %c0_114], %205 {strides = array<i32>} : memref<8x128xf32, #tpu.memory_space<vmem>>, vector<8x128xf32>,
      %cst_115 = arith.constant 0.000000e+00 : f32
      %207 = vector.broadcast %cst_115 : f32 to vector<8x128xf32>
      %c0_116 = arith.constant 0 : index
      %c0_117 = arith.constant 0 : index
      %208 = vector.load %arg7[%c0_116, %c0_117] : memref<8x128xf32, #tpu.memory_space<vmem>>, vector<8x128xf32>
      tpu.vector_store %arg7[%c0_116, %c0_117], %207 {strides = array<i32>} : memref<8x128xf32, #tpu.memory_space<vmem>>, vector<8x128xf32>,
      %cst_118 = arith.constant 0.000000e+00 : f32
      %209 = vector.broadcast %cst_118 : f32 to vector<8x128xf32>
      %c0_119 = arith.constant 0 : index
      %c0_120 = arith.constant 0 : index
      %210 = vector.load %arg8[%c0_119, %c0_120] : memref<8x128xf32, #tpu.memory_space<vmem>>, vector<8x128xf32>
      tpu.vector_store %arg8[%c0_119, %c0_120], %209 {strides = array<i32>} : memref<8x128xf32, #tpu.memory_space<vmem>>, vector<8x128xf32>,
      %cst_121 = arith.constant 0.000000e+00 : f32
      %211 = vector.broadcast %cst_121 : f32 to vector<8x128xf32>
      %c0_122 = arith.constant 0 : index
      %c0_123 = arith.constant 0 : index
      %212 = vector.load %arg9[%c0_122, %c0_123] : memref<8x128xf32, #tpu.memory_space<vmem>>, vector<8x128xf32>
      tpu.vector_store %arg9[%c0_122, %c0_123], %211 {strides = array<i32>} : memref<8x128xf32, #tpu.memory_space<vmem>>, vector<8x128xf32>,
    } else {
    }
    %c0 = arith.constant 0 : index
    %c0_1 = arith.constant 0 : index
    %3 = vector.load %arg3[%c0, %c0_1] : memref<128x128xf32, #tpu.memory_space<vmem>>, vector<128x128xf32>
    %c0_2 = arith.constant 0 : index
    %c0_3 = arith.constant 0 : index
    %4 = vector.load %arg6[%c0_2, %c0_3] : memref<8x128xf32, #tpu.memory_space<vmem>>, vector<8x128xf32>
    %c0_4 = arith.constant 0 : index
    %c0_5 = arith.constant 0 : index
    %5 = vector.load %arg7[%c0_4, %c0_5] : memref<8x128xf32, #tpu.memory_space<vmem>>, vector<8x128xf32>
    %c0_6 = arith.constant 0 : index
    %c0_7 = arith.constant 0 : index
    %6 = vector.load %arg8[%c0_6, %c0_7] : memref<8x128xf32, #tpu.memory_space<vmem>>, vector<8x128xf32>
    %c0_i32_8 = arith.constant 0 : i32
    %cst = arith.constant dense<0.000000e+00> : vector<8x128xf32>
    %7 = tpu.matmul %4, %3, %cst {dimension_numbers = #tpu.dot_dimension_numbers<[1], [0], [0], [1], [0, 0, 1, 1], [], []>} : vector<8x128xf32>, vector<128x128xf32>, vector<8x128xf32> -> vector<8x128xf32>
    %cst_9 = arith.constant 0.949999988 : f32
    %8 = vector.broadcast %cst_9 : f32 to vector<8x128xf32>
    %9 = arith.mulf %8, %5 : vector<8x128xf32>
    %cst_10 = arith.constant 5.000000e-02 : f32
    %10 = vector.broadcast %cst_10 : f32 to vector<8x128xf32>
    %11 = arith.mulf %10, %6 : vector<8x128xf32>
    %12 = arith.addf %9, %11 : vector<8x128xf32>
    %cst_11 = arith.constant 0.899999976 : f32
    %13 = vector.broadcast %cst_11 : f32 to vector<8x128xf32>
    %14 = arith.mulf %13, %6 : vector<8x128xf32>
    %cst_12 = arith.constant 5.000000e-01 : f32
    %15 = vector.broadcast %cst_12 : f32 to vector<8x128xf32>
    %16 = arith.cmpf ogt, %12, %15 : vector<8x128xf32>
    %cst_13 = arith.constant 0.000000e+00 : f32
    %17 = vector.broadcast %cst_13 : f32 to vector<8x128xf32>
    %18 = arith.select %16, %17, %12 : vector<8x128xi1>, vector<8x128xf32>
    %19 = arith.extui %16 : vector<8x128xi1> to vector<8x128xi32>
    %20 = arith.sitofp %19 : vector<8x128xi32> to vector<8x128xf32>
    %21 = arith.index_cast %c0_i32_8 : i32 to index
    %c0_14 = arith.constant 0 : index
    %c0_15 = arith.constant 0 : index
    %22 = vector.load %arg2[%21, %c0_14, %c0_15] : memref<8x8x128xf32, #tpu.memory_space<vmem>>, vector<1x8x128xf32>
    %23 = vector.shape_cast %22 : vector<1x8x128xf32> to vector<8x128xf32>
    %24 = arith.addf %14, %23 : vector<8x128xf32>
    %25 = arith.addf %24, %7 : vector<8x128xf32>
    %26 = arith.extui %16 : vector<8x128xi1> to vector<8x128xi32>
    %27 = arith.sitofp %26 : vector<8x128xi32> to vector<8x128xf32>
    %c0_16 = arith.constant 0 : index
    %c0_17 = arith.constant 0 : index
    %28 = vector.load %arg9[%c0_16, %c0_17] : memref<8x128xf32, #tpu.memory_space<vmem>>, vector<8x128xf32>
    %29 = arith.addf %28, %27 : vector<8x128xf32>
    %c0_18 = arith.constant 0 : index
    %c0_19 = arith.constant 0 : index
    %30 = vector.load %arg9[%c0_18, %c0_19] : memref<8x128xf32, #tpu.memory_space<vmem>>, vector<8x128xf32>
    tpu.vector_store %arg9[%c0_18, %c0_19], %29 {strides = array<i32>} : memref<8x128xf32, #tpu.memory_space<vmem>>, vector<8x128xf32>,
    %c1_i32 = arith.constant 1 : i32
    %cst_20 = arith.constant dense<0.000000e+00> : vector<8x128xf32>
    %31 = tpu.matmul %20, %3, %cst_20 {dimension_numbers = #tpu.dot_dimension_numbers<[1], [0], [0], [1], [0, 0, 1, 1], [], []>} : vector<8x128xf32>, vector<128x128xf32>, vector<8x128xf32> -> vector<8x128xf32>
    %cst_21 = arith.constant 0.949999988 : f32
    %32 = vector.broadcast %cst_21 : f32 to vector<8x128xf32>
    %33 = arith.mulf %32, %18 : vector<8x128xf32>
    %cst_22 = arith.constant 5.000000e-02 : f32
    %34 = vector.broadcast %cst_22 : f32 to vector<8x128xf32>
    %35 = arith.mulf %34, %25 : vector<8x128xf32>
    %36 = arith.addf %33, %35 : vector<8x128xf32>
    %cst_23 = arith.constant 0.899999976 : f32
    %37 = vector.broadcast %cst_23 : f32 to vector<8x128xf32>
    %38 = arith.mulf %37, %25 : vector<8x128xf32>
    %cst_24 = arith.constant 5.000000e-01 : f32
    %39 = vector.broadcast %cst_24 : f32 to vector<8x128xf32>
    %40 = arith.cmpf ogt, %36, %39 : vector<8x128xf32>
    %cst_25 = arith.constant 0.000000e+00 : f32
    %41 = vector.broadcast %cst_25 : f32 to vector<8x128xf32>
    %42 = arith.select %40, %41, %36 : vector<8x128xi1>, vector<8x128xf32>
    %43 = arith.extui %40 : vector<8x128xi1> to vector<8x128xi32>
    %44 = arith.sitofp %43 : vector<8x128xi32> to vector<8x128xf32>
    %45 = arith.index_cast %c1_i32 : i32 to index
    %c0_26 = arith.constant 0 : index
    %c0_27 = arith.constant 0 : index
    %46 = vector.load %arg2[%45, %c0_26, %c0_27] : memref<8x8x128xf32, #tpu.memory_space<vmem>>, vector<1x8x128xf32>
    %47 = vector.shape_cast %46 : vector<1x8x128xf32> to vector<8x128xf32>
    %48 = arith.addf %38, %47 : vector<8x128xf32>
    %49 = arith.addf %48, %31 : vector<8x128xf32>
    %50 = arith.extui %40 : vector<8x128xi1> to vector<8x128xi32>
    %51 = arith.sitofp %50 : vector<8x128xi32> to vector<8x128xf32>
    %c0_28 = arith.constant 0 : index
    %c0_29 = arith.constant 0 : index
    %52 = vector.load %arg9[%c0_28, %c0_29] : memref<8x128xf32, #tpu.memory_space<vmem>>, vector<8x128xf32>
    %53 = arith.addf %52, %51 : vector<8x128xf32>
    %c0_30 = arith.constant 0 : index
    %c0_31 = arith.constant 0 : index
    %54 = vector.load %arg9[%c0_30, %c0_31] : memref<8x128xf32, #tpu.memory_space<vmem>>, vector<8x128xf32>
    tpu.vector_store %arg9[%c0_30, %c0_31], %53 {strides = array<i32>} : memref<8x128xf32, #tpu.memory_space<vmem>>, vector<8x128xf32>,
    %c2_i32 = arith.constant 2 : i32
    %cst_32 = arith.constant dense<0.000000e+00> : vector<8x128xf32>
    %55 = tpu.matmul %44, %3, %cst_32 {dimension_numbers = #tpu.dot_dimension_numbers<[1], [0], [0], [1], [0, 0, 1, 1], [], []>} : vector<8x128xf32>, vector<128x128xf32>, vector<8x128xf32> -> vector<8x128xf32>
    %cst_33 = arith.constant 0.949999988 : f32
    %56 = vector.broadcast %cst_33 : f32 to vector<8x128xf32>
    %57 = arith.mulf %56, %42 : vector<8x128xf32>
    %cst_34 = arith.constant 5.000000e-02 : f32
    %58 = vector.broadcast %cst_34 : f32 to vector<8x128xf32>
    %59 = arith.mulf %58, %49 : vector<8x128xf32>
    %60 = arith.addf %57, %59 : vector<8x128xf32>
    %cst_35 = arith.constant 0.899999976 : f32
    %61 = vector.broadcast %cst_35 : f32 to vector<8x128xf32>
    %62 = arith.mulf %61, %49 : vector<8x128xf32>
    %cst_36 = arith.constant 5.000000e-01 : f32
    %63 = vector.broadcast %cst_36 : f32 to vector<8x128xf32>
    %64 = arith.cmpf ogt, %60, %63 : vector<8x128xf32>
    %cst_37 = arith.constant 0.000000e+00 : f32
    %65 = vector.broadcast %cst_37 : f32 to vector<8x128xf32>
    %66 = arith.select %64, %65, %60 : vector<8x128xi1>, vector<8x128xf32>
    %67 = arith.extui %64 : vector<8x128xi1> to vector<8x128xi32>
    %68 = arith.sitofp %67 : vector<8x128xi32> to vector<8x128xf32>
    %69 = arith.index_cast %c2_i32 : i32 to index
    %c0_38 = arith.constant 0 : index
    %c0_39 = arith.constant 0 : index
    %70 = vector.load %arg2[%69, %c0_38, %c0_39] : memref<8x8x128xf32, #tpu.memory_space<vmem>>, vector<1x8x128xf32>
    %71 = vector.shape_cast %70 : vector<1x8x128xf32> to vector<8x128xf32>
    %72 = arith.addf %62, %71 : vector<8x128xf32>
    %73 = arith.addf %72, %55 : vector<8x128xf32>
    %74 = arith.extui %64 : vector<8x128xi1> to vector<8x128xi32>
    %75 = arith.sitofp %74 : vector<8x128xi32> to vector<8x128xf32>
    %c0_40 = arith.constant 0 : index
    %c0_41 = arith.constant 0 : index
    %76 = vector.load %arg9[%c0_40, %c0_41] : memref<8x128xf32, #tpu.memory_space<vmem>>, vector<8x128xf32>
    %77 = arith.addf %76, %75 : vector<8x128xf32>
    %c0_42 = arith.constant 0 : index
    %c0_43 = arith.constant 0 : index
    %78 = vector.load %arg9[%c0_42, %c0_43] : memref<8x128xf32, #tpu.memory_space<vmem>>, vector<8x128xf32>
    tpu.vector_store %arg9[%c0_42, %c0_43], %77 {strides = array<i32>} : memref<8x128xf32, #tpu.memory_space<vmem>>, vector<8x128xf32>,
    %c3_i32 = arith.constant 3 : i32
    %cst_44 = arith.constant dense<0.000000e+00> : vector<8x128xf32>
    %79 = tpu.matmul %68, %3, %cst_44 {dimension_numbers = #tpu.dot_dimension_numbers<[1], [0], [0], [1], [0, 0, 1, 1], [], []>} : vector<8x128xf32>, vector<128x128xf32>, vector<8x128xf32> -> vector<8x128xf32>
    %cst_45 = arith.constant 0.949999988 : f32
    %80 = vector.broadcast %cst_45 : f32 to vector<8x128xf32>
    %81 = arith.mulf %80, %66 : vector<8x128xf32>
    %cst_46 = arith.constant 5.000000e-02 : f32
    %82 = vector.broadcast %cst_46 : f32 to vector<8x128xf32>
    %83 = arith.mulf %82, %73 : vector<8x128xf32>
    %84 = arith.addf %81, %83 : vector<8x128xf32>
    %cst_47 = arith.constant 0.899999976 : f32
    %85 = vector.broadcast %cst_47 : f32 to vector<8x128xf32>
    %86 = arith.mulf %85, %73 : vector<8x128xf32>
    %cst_48 = arith.constant 5.000000e-01 : f32
    %87 = vector.broadcast %cst_48 : f32 to vector<8x128xf32>
    %88 = arith.cmpf ogt, %84, %87 : vector<8x128xf32>
    %cst_49 = arith.constant 0.000000e+00 : f32
    %89 = vector.broadcast %cst_49 : f32 to vector<8x128xf32>
    %90 = arith.select %88, %89, %84 : vector<8x128xi1>, vector<8x128xf32>
    %91 = arith.extui %88 : vector<8x128xi1> to vector<8x128xi32>
    %92 = arith.sitofp %91 : vector<8x128xi32> to vector<8x128xf32>
    %93 = arith.index_cast %c3_i32 : i32 to index
    %c0_50 = arith.constant 0 : index
    %c0_51 = arith.constant 0 : index
    %94 = vector.load %arg2[%93, %c0_50, %c0_51] : memref<8x8x128xf32, #tpu.memory_space<vmem>>, vector<1x8x128xf32>
    %95 = vector.shape_cast %94 : vector<1x8x128xf32> to vector<8x128xf32>
    %96 = arith.addf %86, %95 : vector<8x128xf32>
    %97 = arith.addf %96, %79 : vector<8x128xf32>
    %98 = arith.extui %88 : vector<8x128xi1> to vector<8x128xi32>
    %99 = arith.sitofp %98 : vector<8x128xi32> to vector<8x128xf32>
    %c0_52 = arith.constant 0 : index
    %c0_53 = arith.constant 0 : index
    %100 = vector.load %arg9[%c0_52, %c0_53] : memref<8x128xf32, #tpu.memory_space<vmem>>, vector<8x128xf32>
    %101 = arith.addf %100, %99 : vector<8x128xf32>
    %c0_54 = arith.constant 0 : index
    %c0_55 = arith.constant 0 : index
    %102 = vector.load %arg9[%c0_54, %c0_55] : memref<8x128xf32, #tpu.memory_space<vmem>>, vector<8x128xf32>
    tpu.vector_store %arg9[%c0_54, %c0_55], %101 {strides = array<i32>} : memref<8x128xf32, #tpu.memory_space<vmem>>, vector<8x128xf32>,
    %c4_i32 = arith.constant 4 : i32
    %cst_56 = arith.constant dense<0.000000e+00> : vector<8x128xf32>
    %103 = tpu.matmul %92, %3, %cst_56 {dimension_numbers = #tpu.dot_dimension_numbers<[1], [0], [0], [1], [0, 0, 1, 1], [], []>} : vector<8x128xf32>, vector<128x128xf32>, vector<8x128xf32> -> vector<8x128xf32>
    %cst_57 = arith.constant 0.949999988 : f32
    %104 = vector.broadcast %cst_57 : f32 to vector<8x128xf32>
    %105 = arith.mulf %104, %90 : vector<8x128xf32>
    %cst_58 = arith.constant 5.000000e-02 : f32
    %106 = vector.broadcast %cst_58 : f32 to vector<8x128xf32>
    %107 = arith.mulf %106, %97 : vector<8x128xf32>
    %108 = arith.addf %105, %107 : vector<8x128xf32>
    %cst_59 = arith.constant 0.899999976 : f32
    %109 = vector.broadcast %cst_59 : f32 to vector<8x128xf32>
    %110 = arith.mulf %109, %97 : vector<8x128xf32>
    %cst_60 = arith.constant 5.000000e-01 : f32
    %111 = vector.broadcast %cst_60 : f32 to vector<8x128xf32>
    %112 = arith.cmpf ogt, %108, %111 : vector<8x128xf32>
    %cst_61 = arith.constant 0.000000e+00 : f32
    %113 = vector.broadcast %cst_61 : f32 to vector<8x128xf32>
    %114 = arith.select %112, %113, %108 : vector<8x128xi1>, vector<8x128xf32>
    %115 = arith.extui %112 : vector<8x128xi1> to vector<8x128xi32>
    %116 = arith.sitofp %115 : vector<8x128xi32> to vector<8x128xf32>
    %117 = arith.index_cast %c4_i32 : i32 to index
    %c0_62 = arith.constant 0 : index
    %c0_63 = arith.constant 0 : index
    %118 = vector.load %arg2[%117, %c0_62, %c0_63] : memref<8x8x128xf32, #tpu.memory_space<vmem>>, vector<1x8x128xf32>
    %119 = vector.shape_cast %118 : vector<1x8x128xf32> to vector<8x128xf32>
    %120 = arith.addf %110, %119 : vector<8x128xf32>
    %121 = arith.addf %120, %103 : vector<8x128xf32>
    %122 = arith.extui %112 : vector<8x128xi1> to vector<8x128xi32>
    %123 = arith.sitofp %122 : vector<8x128xi32> to vector<8x128xf32>
    %c0_64 = arith.constant 0 : index
    %c0_65 = arith.constant 0 : index
    %124 = vector.load %arg9[%c0_64, %c0_65] : memref<8x128xf32, #tpu.memory_space<vmem>>, vector<8x128xf32>
    %125 = arith.addf %124, %123 : vector<8x128xf32>
    %c0_66 = arith.constant 0 : index
    %c0_67 = arith.constant 0 : index
    %126 = vector.load %arg9[%c0_66, %c0_67] : memref<8x128xf32, #tpu.memory_space<vmem>>, vector<8x128xf32>
    tpu.vector_store %arg9[%c0_66, %c0_67], %125 {strides = array<i32>} : memref<8x128xf32, #tpu.memory_space<vmem>>, vector<8x128xf32>,
    %c5_i32 = arith.constant 5 : i32
    %cst_68 = arith.constant dense<0.000000e+00> : vector<8x128xf32>
    %127 = tpu.matmul %116, %3, %cst_68 {dimension_numbers = #tpu.dot_dimension_numbers<[1], [0], [0], [1], [0, 0, 1, 1], [], []>} : vector<8x128xf32>, vector<128x128xf32>, vector<8x128xf32> -> vector<8x128xf32>
    %cst_69 = arith.constant 0.949999988 : f32
    %128 = vector.broadcast %cst_69 : f32 to vector<8x128xf32>
    %129 = arith.mulf %128, %114 : vector<8x128xf32>
    %cst_70 = arith.constant 5.000000e-02 : f32
    %130 = vector.broadcast %cst_70 : f32 to vector<8x128xf32>
    %131 = arith.mulf %130, %121 : vector<8x128xf32>
    %132 = arith.addf %129, %131 : vector<8x128xf32>
    %cst_71 = arith.constant 0.899999976 : f32
    %133 = vector.broadcast %cst_71 : f32 to vector<8x128xf32>
    %134 = arith.mulf %133, %121 : vector<8x128xf32>
    %cst_72 = arith.constant 5.000000e-01 : f32
    %135 = vector.broadcast %cst_72 : f32 to vector<8x128xf32>
    %136 = arith.cmpf ogt, %132, %135 : vector<8x128xf32>
    %cst_73 = arith.constant 0.000000e+00 : f32
    %137 = vector.broadcast %cst_73 : f32 to vector<8x128xf32>
    %138 = arith.select %136, %137, %132 : vector<8x128xi1>, vector<8x128xf32>
    %139 = arith.extui %136 : vector<8x128xi1> to vector<8x128xi32>
    %140 = arith.sitofp %139 : vector<8x128xi32> to vector<8x128xf32>
    %141 = arith.index_cast %c5_i32 : i32 to index
    %c0_74 = arith.constant 0 : index
    %c0_75 = arith.constant 0 : index
    %142 = vector.load %arg2[%141, %c0_74, %c0_75] : memref<8x8x128xf32, #tpu.memory_space<vmem>>, vector<1x8x128xf32>
    %143 = vector.shape_cast %142 : vector<1x8x128xf32> to vector<8x128xf32>
    %144 = arith.addf %134, %143 : vector<8x128xf32>
    %145 = arith.addf %144, %127 : vector<8x128xf32>
    %146 = arith.extui %136 : vector<8x128xi1> to vector<8x128xi32>
    %147 = arith.sitofp %146 : vector<8x128xi32> to vector<8x128xf32>
    %c0_76 = arith.constant 0 : index
    %c0_77 = arith.constant 0 : index
    %148 = vector.load %arg9[%c0_76, %c0_77] : memref<8x128xf32, #tpu.memory_space<vmem>>, vector<8x128xf32>
    %149 = arith.addf %148, %147 : vector<8x128xf32>
    %c0_78 = arith.constant 0 : index
    %c0_79 = arith.constant 0 : index
    %150 = vector.load %arg9[%c0_78, %c0_79] : memref<8x128xf32, #tpu.memory_space<vmem>>, vector<8x128xf32>
    tpu.vector_store %arg9[%c0_78, %c0_79], %149 {strides = array<i32>} : memref<8x128xf32, #tpu.memory_space<vmem>>, vector<8x128xf32>,
    %c6_i32 = arith.constant 6 : i32
    %cst_80 = arith.constant dense<0.000000e+00> : vector<8x128xf32>
    %151 = tpu.matmul %140, %3, %cst_80 {dimension_numbers = #tpu.dot_dimension_numbers<[1], [0], [0], [1], [0, 0, 1, 1], [], []>} : vector<8x128xf32>, vector<128x128xf32>, vector<8x128xf32> -> vector<8x128xf32>
    %cst_81 = arith.constant 0.949999988 : f32
    %152 = vector.broadcast %cst_81 : f32 to vector<8x128xf32>
    %153 = arith.mulf %152, %138 : vector<8x128xf32>
    %cst_82 = arith.constant 5.000000e-02 : f32
    %154 = vector.broadcast %cst_82 : f32 to vector<8x128xf32>
    %155 = arith.mulf %154, %145 : vector<8x128xf32>
    %156 = arith.addf %153, %155 : vector<8x128xf32>
    %cst_83 = arith.constant 0.899999976 : f32
    %157 = vector.broadcast %cst_83 : f32 to vector<8x128xf32>
    %158 = arith.mulf %157, %145 : vector<8x128xf32>
    %cst_84 = arith.constant 5.000000e-01 : f32
    %159 = vector.broadcast %cst_84 : f32 to vector<8x128xf32>
    %160 = arith.cmpf ogt, %156, %159 : vector<8x128xf32>
    %cst_85 = arith.constant 0.000000e+00 : f32
    %161 = vector.broadcast %cst_85 : f32 to vector<8x128xf32>
    %162 = arith.select %160, %161, %156 : vector<8x128xi1>, vector<8x128xf32>
    %163 = arith.extui %160 : vector<8x128xi1> to vector<8x128xi32>
    %164 = arith.sitofp %163 : vector<8x128xi32> to vector<8x128xf32>
    %165 = arith.index_cast %c6_i32 : i32 to index
    %c0_86 = arith.constant 0 : index
    %c0_87 = arith.constant 0 : index
    %166 = vector.load %arg2[%165, %c0_86, %c0_87] : memref<8x8x128xf32, #tpu.memory_space<vmem>>, vector<1x8x128xf32>
    %167 = vector.shape_cast %166 : vector<1x8x128xf32> to vector<8x128xf32>
    %168 = arith.addf %158, %167 : vector<8x128xf32>
    %169 = arith.addf %168, %151 : vector<8x128xf32>
    %170 = arith.extui %160 : vector<8x128xi1> to vector<8x128xi32>
    %171 = arith.sitofp %170 : vector<8x128xi32> to vector<8x128xf32>
    %c0_88 = arith.constant 0 : index
    %c0_89 = arith.constant 0 : index
    %172 = vector.load %arg9[%c0_88, %c0_89] : memref<8x128xf32, #tpu.memory_space<vmem>>, vector<8x128xf32>
    %173 = arith.addf %172, %171 : vector<8x128xf32>
    %c0_90 = arith.constant 0 : index
    %c0_91 = arith.constant 0 : index
    %174 = vector.load %arg9[%c0_90, %c0_91] : memref<8x128xf32, #tpu.memory_space<vmem>>, vector<8x128xf32>
    tpu.vector_store %arg9[%c0_90, %c0_91], %173 {strides = array<i32>} : memref<8x128xf32, #tpu.memory_space<vmem>>, vector<8x128xf32>,
    %c7_i32 = arith.constant 7 : i32
    %cst_92 = arith.constant dense<0.000000e+00> : vector<8x128xf32>
    %175 = tpu.matmul %164, %3, %cst_92 {dimension_numbers = #tpu.dot_dimension_numbers<[1], [0], [0], [1], [0, 0, 1, 1], [], []>} : vector<8x128xf32>, vector<128x128xf32>, vector<8x128xf32> -> vector<8x128xf32>
    %cst_93 = arith.constant 0.949999988 : f32
    %176 = vector.broadcast %cst_93 : f32 to vector<8x128xf32>
    %177 = arith.mulf %176, %162 : vector<8x128xf32>
    %cst_94 = arith.constant 5.000000e-02 : f32
    %178 = vector.broadcast %cst_94 : f32 to vector<8x128xf32>
    %179 = arith.mulf %178, %169 : vector<8x128xf32>
    %180 = arith.addf %177, %179 : vector<8x128xf32>
    %cst_95 = arith.constant 0.899999976 : f32
    %181 = vector.broadcast %cst_95 : f32 to vector<8x128xf32>
    %182 = arith.mulf %181, %169 : vector<8x128xf32>
    %cst_96 = arith.constant 5.000000e-01 : f32
    %183 = vector.broadcast %cst_96 : f32 to vector<8x128xf32>
    %184 = arith.cmpf ogt, %180, %183 : vector<8x128xf32>
    %cst_97 = arith.constant 0.000000e+00 : f32
    %185 = vector.broadcast %cst_97 : f32 to vector<8x128xf32>
    %186 = arith.select %184, %185, %180 : vector<8x128xi1>, vector<8x128xf32>
    %187 = arith.extui %184 : vector<8x128xi1> to vector<8x128xi32>
    %188 = arith.sitofp %187 : vector<8x128xi32> to vector<8x128xf32>
    %189 = arith.index_cast %c7_i32 : i32 to index
    %c0_98 = arith.constant 0 : index
    %c0_99 = arith.constant 0 : index
    %190 = vector.load %arg2[%189, %c0_98, %c0_99] : memref<8x8x128xf32, #tpu.memory_space<vmem>>, vector<1x8x128xf32>
    %191 = vector.shape_cast %190 : vector<1x8x128xf32> to vector<8x128xf32>
    %192 = arith.addf %182, %191 : vector<8x128xf32>
    %193 = arith.addf %192, %175 : vector<8x128xf32>
    %194 = arith.extui %184 : vector<8x128xi1> to vector<8x128xi32>
    %195 = arith.sitofp %194 : vector<8x128xi32> to vector<8x128xf32>
    %c0_100 = arith.constant 0 : index
    %c0_101 = arith.constant 0 : index
    %196 = vector.load %arg9[%c0_100, %c0_101] : memref<8x128xf32, #tpu.memory_space<vmem>>, vector<8x128xf32>
    %197 = arith.addf %196, %195 : vector<8x128xf32>
    %c0_102 = arith.constant 0 : index
    %c0_103 = arith.constant 0 : index
    %198 = vector.load %arg9[%c0_102, %c0_103] : memref<8x128xf32, #tpu.memory_space<vmem>>, vector<8x128xf32>
    tpu.vector_store %arg9[%c0_102, %c0_103], %197 {strides = array<i32>} : memref<8x128xf32, #tpu.memory_space<vmem>>, vector<8x128xf32>,
    %c8_i32 = arith.constant 8 : i32
    %c0_104 = arith.constant 0 : index
    %c0_105 = arith.constant 0 : index
    %199 = vector.load %arg6[%c0_104, %c0_105] : memref<8x128xf32, #tpu.memory_space<vmem>>, vector<8x128xf32>
    tpu.vector_store %arg6[%c0_104, %c0_105], %188 {strides = array<i32>} : memref<8x128xf32, #tpu.memory_space<vmem>>, vector<8x128xf32>,
    %c0_106 = arith.constant 0 : index
    %c0_107 = arith.constant 0 : index
    %200 = vector.load %arg7[%c0_106, %c0_107] : memref<8x128xf32, #tpu.memory_space<vmem>>, vector<8x128xf32>
    tpu.vector_store %arg7[%c0_106, %c0_107], %186 {strides = array<i32>} : memref<8x128xf32, #tpu.memory_space<vmem>>, vector<8x128xf32>,
    %c0_108 = arith.constant 0 : index
    %c0_109 = arith.constant 0 : index
    %201 = vector.load %arg8[%c0_108, %c0_109] : memref<8x128xf32, #tpu.memory_space<vmem>>, vector<8x128xf32>
    tpu.vector_store %arg8[%c0_108, %c0_109], %193 {strides = array<i32>} : memref<8x128xf32, #tpu.memory_space<vmem>>, vector<8x128xf32>,
    %c0_i32_110 = arith.constant 0 : i32
    %202 = arith.cmpi eq, %arg1, %c0_i32_110 : i32
    %203 = arith.extui %202 : i1 to i32
    %c0_i32_111 = arith.constant 0 : i32
    %204 = arith.cmpi ne, %203, %c0_i32_111 : i32
    scf.if %204 {
      %c0_112 = arith.constant 0 : index
      %c0_113 = arith.constant 0 : index
      %205 = vector.load %arg9[%c0_112, %c0_113] : memref<8x128xf32, #tpu.memory_space<vmem>>, vector<8x128xf32>
      %c0_114 = arith.constant 0 : index
      %c0_115 = arith.constant 0 : index
      %206 = vector.load %arg4[%c0_114, %c0_115] : memref<128x128xf32, #tpu.memory_space<vmem>>, vector<128x128xf32>
      %cst_116 = arith.constant dense<0.000000e+00> : vector<8x128xf32>
      %207 = tpu.matmul %205, %206, %cst_116 {dimension_numbers = #tpu.dot_dimension_numbers<[1], [0], [0], [1], [0, 0, 1, 1], [], []>} : vector<8x128xf32>, vector<128x128xf32>, vector<8x128xf32> -> vector<8x128xf32>
      %cst_117 = arith.constant 1.250000e-01 : f32
      %208 = vector.broadcast %cst_117 : f32 to vector<8x128xf32>
      %209 = arith.mulf %207, %208 : vector<8x128xf32>
      %c0_118 = arith.constant 0 : index
      %c0_119 = arith.constant 0 : index
      %210 = vector.load %arg5[%c0_118, %c0_119] : memref<8x128xf32, #tpu.memory_space<vmem>>, vector<8x128xf32>
      tpu.vector_store %arg5[%c0_118, %c0_119], %209 {strides = array<i32>} : memref<8x128xf32, #tpu.memory_space<vmem>>, vector<8x128xf32>,
    } else {
    }
    return
  }
  func.func @transform_0(%arg0: i32, %arg1: i32) -> (i32, i32, i32) {
    %c0_i32 = arith.constant 0 : i32
    %c0_i32_0 = arith.constant 0 : i32
    return %arg1, %arg0, %c0_i32 : i32, i32, i32
  }
  func.func @transform_1(%arg0: i32, %arg1: i32) -> (i32, i32) {
    %c0_i32 = arith.constant 0 : i32
    %c0_i32_0 = arith.constant 0 : i32
    %c0_i32_1 = arith.constant 0 : i32
    return %c0_i32, %c0_i32_0 : i32, i32
  }
  func.func @transform_2(%arg0: i32, %arg1: i32) -> (i32, i32) {
    %c0_i32 = arith.constant 0 : i32
    %c0_i32_0 = arith.constant 0 : i32
    %c0_i32_1 = arith.constant 0 : i32
    return %c0_i32, %c0_i32_0 : i32, i32
  }
  func.func @transform_3(%arg0: i32, %arg1: i32) -> (i32, i32) {
    %c0_i32 = arith.constant 0 : i32
    %c0_i32_0 = arith.constant 0 : i32
    return %arg0, %c0_i32 : i32, i32
  }
}

</mosaic_0001>

<llo_original>
// kernel: tpu_custom_call.1
$region0: #{tpu_custom_call.1}
  #allocation0 [shape = 'u32[]', space=smem, size = 0x4, offset = 0x4, fixed_abs, tag = 'smem constant byte address 0x4 - core index']
  #allocation1 [shape = 'u32[72,128]{1,0:T(1,128)}', space=vmem, size = 0x9000, scoped, tag = 'internal scratch']
  #allocation2 [shape = 'f32[8,128]{1,0:T(8,128)}', space=vmem, size = 0x1000, scoped, tag = 'scratch operand']
  #allocation3 [shape = 'f32[8,128]{1,0:T(8,128)}', space=vmem, size = 0x1000, scoped, tag = 'scratch operand']
  #allocation4 [shape = 'f32[8,128]{1,0:T(8,128)}', space=vmem, size = 0x1000, scoped, tag = 'scratch operand']
  #allocation5 [shape = 'f32[8,128]{1,0:T(8,128)}', space=vmem, size = 0x1000, scoped, tag = 'scratch operand']
  %s0 = inlined_call_operand.hbm [shape: f32[8,8,128], index: 0, kind: input, shape index: {}]
  %s1 = inlined_call_operand.hbm [shape: f32[128,128], index: 1, kind: input, shape index: {}]
  %s2 = inlined_call_operand.hbm [shape: f32[128,128], index: 2, kind: input, shape index: {}]
  %s3 = inlined_call_operand.hbm [shape: f32[8,128], index: 3, kind: output, shape index: {}]
  %s4 = sld [smem:[#allocation0]]
  $region42: #{tpu_custom_call.1} parent=0
    _
  %s6 = ssub.s32 1, %s4
  %s7 = scalar_select 0, %s6, %s4
  $region1: #{tpu_custom_call.1} parent=0
    #allocation6 [shape = 'u8[32768]{0}', space=vmem, size = 0x8000, scoped, tag = 'input window, operand 0, single buffered']
    #allocation7 [shape = 's32[1]{0}', space=sflag, size = 0x4, scoped, tag = 'scoped memory for tpu_custom_call.1']
    #allocation8 [shape = 's32[1]{0}', space=sflag, size = 0x4, scoped, tag = 'scoped memory for tpu_custom_call.1']
    #allocation9 [shape = 'u8[65536]{0}', space=vmem, size = 0x10000, scoped, tag = 'input window, operand 1, single buffered']
    #allocation10 [shape = 's32[1]{0}', space=sflag, size = 0x4, scoped, tag = 'scoped memory for tpu_custom_call.1']
    #allocation11 [shape = 'u8[65536]{0}', space=vmem, size = 0x10000, scoped, tag = 'input window, operand 2, single buffered']
    #allocation12 [shape = 'u8[4096]{0}', space=vmem, size = 0x1000, scoped, tag = 'output window, operand 0, single buffered']
    %8 = vsyncpa [#allocation7], 0
    %9 = vsyncpa [#allocation10], 0
    %10 = vsyncpa [#allocation8], 0
    // Predicated region
    $region2: #{tpu_custom_call.1} parent=1 // pred_check
      _
    $region3: #{tpu_custom_call.1} parent=1 // pred_check_branch
      %12 = sbr.rel (0) target = $region5
    $region4: #{tpu_custom_call.1} parent=1 // pred_region
      %14 = vsyncadd [#allocation7], 0
      %s15 = sshll.u32 %s0, 4
      %s16 = int_to_ptr.hbm [resolvable:$true] %s15
      %s17 = sshll.u32 [#allocation6], 4
      %s18 = int_to_ptr.vmem [resolvable:$true] %s17
      %23 = dma.hbm_to_vmem [thread:$0]  %s16, 1024, %s18, [#allocation7], 128, 128, 8
    $region5: #{tpu_custom_call.1} parent=1 // pred_fallthru
      _
    // Predicated region
    $region6: #{tpu_custom_call.1} parent=1 // pred_check
      _
    $region7: #{tpu_custom_call.1} parent=1 // pred_check_branch
      %25 = sbr.rel (0) target = $region9
    $region8: #{tpu_custom_call.1} parent=1 // pred_region
      %27 = vsyncadd [#allocation10], 0
      %s28 = sshll.u32 %s1, 4
      %s29 = int_to_ptr.hbm [resolvable:$true] %s28
      %s30 = sshll.u32 [#allocation9], 4
      %s31 = int_to_ptr.vmem [resolvable:$true] %s30
      %36 = dma.hbm_to_vmem [thread:$0]  %s29, 2048, %s31, [#allocation10], 128, 128, 8
    $region9: #{tpu_custom_call.1} parent=1 // pred_fallthru
      _
    // Predicated region
    $region10: #{tpu_custom_call.1} parent=1 // pred_check
      _
    $region11: #{tpu_custom_call.1} parent=1 // pred_check_branch
      %38 = sbr.rel (0) target = $region13
    $region12: #{tpu_custom_call.1} parent=1 // pred_region
      %40 = vsyncadd [#allocation10], 0
      %s41 = sshll.u32 %s2, 4
      %s42 = int_to_ptr.hbm [resolvable:$true] %s41
      %s43 = sshll.u32 [#allocation11], 4
      %s44 = int_to_ptr.vmem [resolvable:$true] %s43
      %49 = dma.hbm_to_vmem [thread:$0]  %s42, 2048, %s44, [#allocation10], 128, 128, 8
    $region13: #{tpu_custom_call.1} parent=1 // pred_fallthru
      _
    // Predicated region
    $region14: #{tpu_custom_call.1} parent=1 // pred_check
      _
    $region15: #{tpu_custom_call.1} parent=1 // pred_check_branch
      %51 = sbr.rel (0) target = $region17
    $region16: #{tpu_custom_call.1} parent=1 // pred_region
      %53 = dma.done [#allocation7], 1024
    $region17: #{tpu_custom_call.1} parent=1 // pred_fallthru
      _
    // Predicated region
    $region18: #{tpu_custom_call.1} parent=1 // pred_check
      _
    $region19: #{tpu_custom_call.1} parent=1 // pred_check_branch
      %55 = sbr.rel (0) target = $region21
    $region20: #{tpu_custom_call.1} parent=1 // pred_region
      %57 = dma.done [#allocation10], 2048
    $region21: #{tpu_custom_call.1} parent=1 // pred_fallthru
      _
    // Predicated region
    $region22: #{tpu_custom_call.1} parent=1 // pred_check
      _
    $region23: #{tpu_custom_call.1} parent=1 // pred_check_branch
      %59 = sbr.rel (0) target = $region25
    $region24: #{tpu_custom_call.1} parent=1 // pred_region
      %61 = dma.done [#allocation10], 2048
    $region25: #{tpu_custom_call.1} parent=1 // pred_fallthru
      _
    %p62 = scmp.eq.s32.totalorder 0, 0
    // Predicated region
    $region26: #{tpu_custom_call.1} parent=1 // pred_check
      %p63 = pneg %p62
    $region27: #{tpu_custom_call.1} parent=1 // pred_check_branch
      %65 = sbr.rel (%p63) target = $region29
    $region28: #{tpu_custom_call.1} parent=1 // pred_region
      %66 = vst [vmem:[#allocation2] sm:$0xff] 0.0
      %67 = vst [vmem:[#allocation3] sm:$0xff] 0.0
      %68 = vst [vmem:[#allocation4] sm:$0xff] 0.0
      %69 = vst [vmem:[#allocation5] sm:$0xff] 0.0
    $region29: #{tpu_custom_call.1} parent=1 // pred_fallthru
      _
    %v70 = vld [vmem:[#allocation9] sm:$0xff]
    %v71 = vld [vmem:[#allocation9 + $0x8] sm:$0xff]
    %v72 = vld [vmem:[#allocation9 + $0x10] sm:$0xff]
    %v73 = vld [vmem:[#allocation9 + $0x18] sm:$0xff]
    %v74 = vld [vmem:[#allocation9 + $0x20] sm:$0xff]
    %v75 = vld [vmem:[#allocation9 + $0x28] sm:$0xff]
    %v76 = vld [vmem:[#allocation9 + $0x30] sm:$0xff]
    %v77 = vld [vmem:[#allocation9 + $0x38] sm:$0xff]
    %v78 = vld [vmem:[#allocation9 + $0x40] sm:$0xff]
    %v79 = vld [vmem:[#allocation9 + $0x48] sm:$0xff]
    %v80 = vld [vmem:[#allocation9 + $0x50] sm:$0xff]
    %v81 = vld [vmem:[#allocation9 + $0x58] sm:$0xff]
    %v82 = vld [vmem:[#allocation9 + $0x60] sm:$0xff]
    %v83 = vld [vmem:[#allocation9 + $0x68] sm:$0xff]
    %v84 = vld [vmem:[#allocation9 + $0x70] sm:$0xff]
    %v85 = vld [vmem:[#allocation9 + $0x78] sm:$0xff]
    %v86 = vld [vmem:[#allocation2] sm:$0xff]
    %v87 = vld [vmem:[#allocation3] sm:$0xff]
    %v88 = vld [vmem:[#allocation4] sm:$0xff]
    %89 = vmatpush.msra.mxu0 %v85
    %90 = vmatpush.msra.mxu0 %v84
    %91 = vmatpush.msra.mxu0 %v83
    %92 = vmatpush.msra.mxu0 %v82
    %93 = vmatpush.msra.mxu0 %v81
    %94 = vmatpush.msra.mxu0 %v80
    %95 = vmatpush.msra.mxu0 %v79
    %96 = vmatpush.msra.mxu0 %v78
    %97 = vmatpush.msra.mxu0 %v77
    %98 = vmatpush.msra.mxu0 %v76
    %99 = vmatpush.msra.mxu0 %v75
    %100 = vmatpush.msra.mxu0 %v74
    %101 = vmatpush.msra.mxu0 %v73
    %102 = vmatpush.msra.mxu0 %v72
    %103 = vmatpush.msra.mxu0 %v71
    %104 = vmatpush.msra.mxu0 %v70
    %105 = vmatmul.f32.gmra.mxu0 %v86
    %v106 = vpop.f32.mrf.mxu0
    %v107 = vadd.f32 0.0, %v106
    %108 = vdwg.mxu0
    %v109 = vmul.f32 %v87, 0.95
    %v110 = vmul.f32 %v88, 0.05
    %v111 = vadd.f32 %v109, %v110
    %v112 = vmul.f32 %v88, 0.9
    %vm113 = vcmp.gt.f32.partialorder %v111, 0.5
    %v114 = vsel %vm113, 0.0, %v111
    %v115 = vsel %vm113, 1, 0
    %v116 = vcvt.s32.f32 %v115
    %v117 = vld [vmem:[#allocation6] sm:$0xff]
    %v118 = vadd.f32 %v112, %v117
    %v119 = vadd.f32 %v118, %v107
    %v120 = vld [vmem:[#allocation5] sm:$0xff]
    %v121 = vadd.f32 %v120, %v116
    %122 = vst [vmem:[#allocation5] sm:$0xff] %v121
    %123 = vmatpush.msra.mxu0 %v85
    %124 = vmatpush.msra.mxu0 %v84
    %125 = vmatpush.msra.mxu0 %v83
    %126 = vmatpush.msra.mxu0 %v82
    %127 = vmatpush.msra.mxu0 %v81
    %128 = vmatpush.msra.mxu0 %v80
    %129 = vmatpush.msra.mxu0 %v79
    %130 = vmatpush.msra.mxu0 %v78
    %131 = vmatpush.msra.mxu0 %v77
    %132 = vmatpush.msra.mxu0 %v76
    %133 = vmatpush.msra.mxu0 %v75
    %134 = vmatpush.msra.mxu0 %v74
    %135 = vmatpush.msra.mxu0 %v73
    %136 = vmatpush.msra.mxu0 %v72
    %137 = vmatpush.msra.mxu0 %v71
    %138 = vmatpush.msra.mxu0 %v70
    %139 = vmatmul.f32.gmra.mxu0 %v116
    %v140 = vpop.f32.mrf.mxu0
    %v141 = vadd.f32 0.0, %v140
    %142 = vdwg.mxu0
    %v143 = vmul.f32 %v114, 0.95
    %v144 = vmul.f32 %v119, 0.05
    %v145 = vadd.f32 %v143, %v144
    %v146 = vmul.f32 %v119, 0.9
    %vm147 = vcmp.gt.f32.partialorder %v145, 0.5
    %v148 = vsel %vm147, 0.0, %v145
    %v149 = vsel %vm147, 1, 0
    %v150 = vcvt.s32.f32 %v149
    %s151 = scalar_lea.vmem [#allocation6], 8
    %v152 = vld [vmem:[%s151] sm:$0xff]
    %v153 = vadd.f32 %v146, %v152
    %v154 = vadd.f32 %v153, %v141
    %v155 = vld [vmem:[#allocation5] sm:$0xff]
    %v156 = vadd.f32 %v155, %v150
    %157 = vst [vmem:[#allocation5] sm:$0xff] %v156
    %158 = vmatpush.msra.mxu0 %v85
    %159 = vmatpush.msra.mxu0 %v84
    %160 = vmatpush.msra.mxu0 %v83
    %161 = vmatpush.msra.mxu0 %v82
    %162 = vmatpush.msra.mxu0 %v81
    %163 = vmatpush.msra.mxu0 %v80
    %164 = vmatpush.msra.mxu0 %v79
    %165 = vmatpush.msra.mxu0 %v78
    %166 = vmatpush.msra.mxu0 %v77
    %167 = vmatpush.msra.mxu0 %v76
    %168 = vmatpush.msra.mxu0 %v75
    %169 = vmatpush.msra.mxu0 %v74
    %170 = vmatpush.msra.mxu0 %v73
    %171 = vmatpush.msra.mxu0 %v72
    %172 = vmatpush.msra.mxu0 %v71
    %173 = vmatpush.msra.mxu0 %v70
    %174 = vmatmul.f32.gmra.mxu0 %v150
    %v175 = vpop.f32.mrf.mxu0
    %v176 = vadd.f32 0.0, %v175
    %177 = vdwg.mxu0
    %v178 = vmul.f32 %v148, 0.95
    %v179 = vmul.f32 %v154, 0.05
    %v180 = vadd.f32 %v178, %v179
    %v181 = vmul.f32 %v154, 0.9
    %vm182 = vcmp.gt.f32.partialorder %v180, 0.5
    %v183 = vsel %vm182, 0.0, %v180
    %v184 = vsel %vm182, 1, 0
    %v185 = vcvt.s32.f32 %v184
    %s186 = scalar_lea.vmem [#allocation6], 16
    %v187 = vld [vmem:[%s186] sm:$0xff]
    %v188 = vadd.f32 %v181, %v187
    %v189 = vadd.f32 %v188, %v176
    %v190 = vld [vmem:[#allocation5] sm:$0xff]
    %v191 = vadd.f32 %v190, %v185
    %192 = vst [vmem:[#allocation5] sm:$0xff] %v191
    %193 = vmatpush.msra.mxu0 %v85
    %194 = vmatpush.msra.mxu0 %v84
    %195 = vmatpush.msra.mxu0 %v83
    %196 = vmatpush.msra.mxu0 %v82
    %197 = vmatpush.msra.mxu0 %v81
    %198 = vmatpush.msra.mxu0 %v80
    %199 = vmatpush.msra.mxu0 %v79
    %200 = vmatpush.msra.mxu0 %v78
    %201 = vmatpush.msra.mxu0 %v77
    %202 = vmatpush.msra.mxu0 %v76
    %203 = vmatpush.msra.mxu0 %v75
    %204 = vmatpush.msra.mxu0 %v74
    %205 = vmatpush.msra.mxu0 %v73
    %206 = vmatpush.msra.mxu0 %v72
    %207 = vmatpush.msra.mxu0 %v71
    %208 = vmatpush.msra.mxu0 %v70
    %209 = vmatmul.f32.gmra.mxu0 %v185
    %v210 = vpop.f32.mrf.mxu0
    %v211 = vadd.f32 0.0, %v210
    %212 = vdwg.mxu0
    %v213 = vmul.f32 %v183, 0.95
    %v214 = vmul.f32 %v189, 0.05
    %v215 = vadd.f32 %v213, %v214
    %v216 = vmul.f32 %v189, 0.9
    %vm217 = vcmp.gt.f32.partialorder %v215, 0.5
    %v218 = vsel %vm217, 0.0, %v215
    %v219 = vsel %vm217, 1, 0
    %v220 = vcvt.s32.f32 %v219
    %s221 = scalar_lea.vmem [#allocation6], 24
    %v222 = vld [vmem:[%s221] sm:$0xff]
    %v223 = vadd.f32 %v216, %v222
    %v224 = vadd.f32 %v223, %v211
    %v225 = vld [vmem:[#allocation5] sm:$0xff]
    %v226 = vadd.f32 %v225, %v220
    %227 = vst [vmem:[#allocation5] sm:$0xff] %v226
    %228 = vmatpush.msra.mxu0 %v85
    %229 = vmatpush.msra.mxu0 %v84
    %230 = vmatpush.msra.mxu0 %v83
    %231 = vmatpush.msra.mxu0 %v82
    %232 = vmatpush.msra.mxu0 %v81
    %233 = vmatpush.msra.mxu0 %v80
    %234 = vmatpush.msra.mxu0 %v79
    %235 = vmatpush.msra.mxu0 %v78
    %236 = vmatpush.msra.mxu0 %v77
    %237 = vmatpush.msra.mxu0 %v76
    %238 = vmatpush.msra.mxu0 %v75
    %239 = vmatpush.msra.mxu0 %v74
    %240 = vmatpush.msra.mxu0 %v73
    %241 = vmatpush.msra.mxu0 %v72
    %242 = vmatpush.msra.mxu0 %v71
    %243 = vmatpush.msra.mxu0 %v70
    %244 = vmatmul.f32.gmra.mxu0 %v220
    %v245 = vpop.f32.mrf.mxu0
    %v246 = vadd.f32 0.0, %v245
    %247 = vdwg.mxu0
    %v248 = vmul.f32 %v218, 0.95
    %v249 = vmul.f32 %v224, 0.05
    %v250 = vadd.f32 %v248, %v249
    %v251 = vmul.f32 %v224, 0.9
    %vm252 = vcmp.gt.f32.partialorder %v250, 0.5
    %v253 = vsel %vm252, 0.0, %v250
    %v254 = vsel %vm252, 1, 0
    %v255 = vcvt.s32.f32 %v254
    %s256 = scalar_lea.vmem [#allocation6], 32
    %v257 = vld [vmem:[%s256] sm:$0xff]
    %v258 = vadd.f32 %v251, %v257
    %v259 = vadd.f32 %v258, %v246
    %v260 = vld [vmem:[#allocation5] sm:$0xff]
    %v261 = vadd.f32 %v260, %v255
    %262 = vst [vmem:[#allocation5] sm:$0xff] %v261
    %263 = vmatpush.msra.mxu0 %v85
    %264 = vmatpush.msra.mxu0 %v84
    %265 = vmatpush.msra.mxu0 %v83
    %266 = vmatpush.msra.mxu0 %v82
    %267 = vmatpush.msra.mxu0 %v81
    %268 = vmatpush.msra.mxu0 %v80
    %269 = vmatpush.msra.mxu0 %v79
    %270 = vmatpush.msra.mxu0 %v78
    %271 = vmatpush.msra.mxu0 %v77
    %272 = vmatpush.msra.mxu0 %v76
    %273 = vmatpush.msra.mxu0 %v75
    %274 = vmatpush.msra.mxu0 %v74
    %275 = vmatpush.msra.mxu0 %v73
    %276 = vmatpush.msra.mxu0 %v72
    %277 = vmatpush.msra.mxu0 %v71
    %278 = vmatpush.msra.mxu0 %v70
    %279 = vmatmul.f32.gmra.mxu0 %v255
    %v280 = vpop.f32.mrf.mxu0
    %v281 = vadd.f32 0.0, %v280
    %282 = vdwg.mxu0
    %v283 = vmul.f32 %v253, 0.95
    %v284 = vmul.f32 %v259, 0.05
    %v285 = vadd.f32 %v283, %v284
    %v286 = vmul.f32 %v259, 0.9
    %vm287 = vcmp.gt.f32.partialorder %v285, 0.5
    %v288 = vsel %vm287, 0.0, %v285
    %v289 = vsel %vm287, 1, 0
    %v290 = vcvt.s32.f32 %v289
    %s291 = scalar_lea.vmem [#allocation6], 40
    %v292 = vld [vmem:[%s291] sm:$0xff]
    %v293 = vadd.f32 %v286, %v292
    %v294 = vadd.f32 %v293, %v281
    %v295 = vld [vmem:[#allocation5] sm:$0xff]
    %v296 = vadd.f32 %v295, %v290
    %297 = vst [vmem:[#allocation5] sm:$0xff] %v296
    %298 = vmatpush.msra.mxu0 %v85
    %299 = vmatpush.msra.mxu0 %v84
    %300 = vmatpush.msra.mxu0 %v83
    %301 = vmatpush.msra.mxu0 %v82
    %302 = vmatpush.msra.mxu0 %v81
    %303 = vmatpush.msra.mxu0 %v80
    %304 = vmatpush.msra.mxu0 %v79
    %305 = vmatpush.msra.mxu0 %v78
    %306 = vmatpush.msra.mxu0 %v77
    %307 = vmatpush.msra.mxu0 %v76
    %308 = vmatpush.msra.mxu0 %v75
    %309 = vmatpush.msra.mxu0 %v74
    %310 = vmatpush.msra.mxu0 %v73
    %311 = vmatpush.msra.mxu0 %v72
    %312 = vmatpush.msra.mxu0 %v71
    %313 = vmatpush.msra.mxu0 %v70
    %314 = vmatmul.f32.gmra.mxu0 %v290
    %v315 = vpop.f32.mrf.mxu0
    %v316 = vadd.f32 0.0, %v315
    %317 = vdwg.mxu0
    %v318 = vmul.f32 %v288, 0.95
    %v319 = vmul.f32 %v294, 0.05
    %v320 = vadd.f32 %v318, %v319
    %v321 = vmul.f32 %v294, 0.9
    %vm322 = vcmp.gt.f32.partialorder %v320, 0.5
    %v323 = vsel %vm322, 0.0, %v320
    %v324 = vsel %vm322, 1, 0
    %v325 = vcvt.s32.f32 %v324
    %s326 = scalar_lea.vmem [#allocation6], 48
    %v327 = vld [vmem:[%s326] sm:$0xff]
    %v328 = vadd.f32 %v321, %v327
    %v329 = vadd.f32 %v328, %v316
    %v330 = vld [vmem:[#allocation5] sm:$0xff]
    %v331 = vadd.f32 %v330, %v325
    %332 = vst [vmem:[#allocation5] sm:$0xff] %v331
    %333 = vmatpush.msra.mxu0 %v85
    %334 = vmatpush.msra.mxu0 %v84
    %335 = vmatpush.msra.mxu0 %v83
    %336 = vmatpush.msra.mxu0 %v82
    %337 = vmatpush.msra.mxu0 %v81
    %338 = vmatpush.msra.mxu0 %v80
    %339 = vmatpush.msra.mxu0 %v79
    %340 = vmatpush.msra.mxu0 %v78
    %341 = vmatpush.msra.mxu0 %v77
    %342 = vmatpush.msra.mxu0 %v76
    %343 = vmatpush.msra.mxu0 %v75
    %344 = vmatpush.msra.mxu0 %v74
    %345 = vmatpush.msra.mxu0 %v73
    %346 = vmatpush.msra.mxu0 %v72
    %347 = vmatpush.msra.mxu0 %v71
    %348 = vmatpush.msra.mxu0 %v70
    %349 = vmatmul.f32.gmra.mxu0 %v325
    %v350 = vpop.f32.mrf.mxu0
    %v351 = vadd.f32 0.0, %v350
    %352 = vdwg.mxu0
    %v353 = vmul.f32 %v323, 0.95
    %v354 = vmul.f32 %v329, 0.05
    %v355 = vadd.f32 %v353, %v354
    %v356 = vmul.f32 %v329, 0.9
    %vm357 = vcmp.gt.f32.partialorder %v355, 0.5
    %v358 = vsel %vm357, 0.0, %v355
    %v359 = vsel %vm357, 1, 0
    %v360 = vcvt.s32.f32 %v359
    %s361 = scalar_lea.vmem [#allocation6], 56
    %v362 = vld [vmem:[%s361] sm:$0xff]
    %v363 = vadd.f32 %v356, %v362
    %v364 = vadd.f32 %v363, %v351
    %v365 = vld [vmem:[#allocation5] sm:$0xff]
    %v366 = vadd.f32 %v365, %v360
    %367 = vst [vmem:[#allocation5] sm:$0xff] %v366
    %368 = vst [vmem:[#allocation2] sm:$0xff] %v360
    %369 = vst [vmem:[#allocation3] sm:$0xff] %v358
    %370 = vst [vmem:[#allocation4] sm:$0xff] %v364
    // Predicated region
    $region30: #{tpu_custom_call.1} parent=1 // pred_check
      %p371 = pneg %p62
    $region31: #{tpu_custom_call.1} parent=1 // pred_check_branch
      %373 = sbr.rel (%p371) target = $region33
    $region32: #{tpu_custom_call.1} parent=1 // pred_region
      %v374 = vld [vmem:[#allocation5] sm:$0xff]
      %v375 = vld [vmem:[#allocation11] sm:$0xff]
      %v376 = vld [vmem:[#allocation11 + $0x8] sm:$0xff]
      %v377 = vld [vmem:[#allocation11 + $0x10] sm:$0xff]
      %v378 = vld [vmem:[#allocation11 + $0x18] sm:$0xff]
      %v379 = vld [vmem:[#allocation11 + $0x20] sm:$0xff]
      %v380 = vld [vmem:[#allocation11 + $0x28] sm:$0xff]
      %v381 = vld [vmem:[#allocation11 + $0x30] sm:$0xff]
      %v382 = vld [vmem:[#allocation11 + $0x38] sm:$0xff]
      %v383 = vld [vmem:[#allocation11 + $0x40] sm:$0xff]
      %v384 = vld [vmem:[#allocation11 + $0x48] sm:$0xff]
      %v385 = vld [vmem:[#allocation11 + $0x50] sm:$0xff]
      %v386 = vld [vmem:[#allocation11 + $0x58] sm:$0xff]
      %v387 = vld [vmem:[#allocation11 + $0x60] sm:$0xff]
      %v388 = vld [vmem:[#allocation11 + $0x68] sm:$0xff]
      %v389 = vld [vmem:[#allocation11 + $0x70] sm:$0xff]
      %v390 = vld [vmem:[#allocation11 + $0x78] sm:$0xff]
      %391 = vmatpush.msra.mxu0 %v390
      %392 = vmatpush.msra.mxu0 %v389
      %393 = vmatpush.msra.mxu0 %v388
      %394 = vmatpush.msra.mxu0 %v387
      %395 = vmatpush.msra.mxu0 %v386
      %396 = vmatpush.msra.mxu0 %v385
      %397 = vmatpush.msra.mxu0 %v384
      %398 = vmatpush.msra.mxu0 %v383
      %399 = vmatpush.msra.mxu0 %v382
      %400 = vmatpush.msra.mxu0 %v381
      %401 = vmatpush.msra.mxu0 %v380
      %402 = vmatpush.msra.mxu0 %v379
      %403 = vmatpush.msra.mxu0 %v378
      %404 = vmatpush.msra.mxu0 %v377
      %405 = vmatpush.msra.mxu0 %v376
      %406 = vmatpush.msra.mxu0 %v375
      %407 = vmatmul.f32.gmra.mxu0 %v374
      %v408 = vpop.f32.mrf.mxu0
      %v409 = vadd.f32 0.0, %v408
      %410 = vdwg.mxu0
      %v411 = vmul.f32 %v409, 0.125
      %412 = vst [vmem:[#allocation12] sm:$0xff] %v411
    $region33: #{tpu_custom_call.1} parent=1 // pred_fallthru
      _
    // Predicated region
    $region34: #{tpu_custom_call.1} parent=1 // pred_check
      _
    $region35: #{tpu_custom_call.1} parent=1 // pred_check_branch
      %414 = sbr.rel (0) target = $region37
    $region36: #{tpu_custom_call.1} parent=1 // pred_region
      %416 = vsyncadd [#allocation8], 0
      %s418 = sshll.u32 [#allocation12], 4
      %s419 = int_to_ptr.vmem [resolvable:$true] %s418
      %s420 = sshll.u32 %s3, 4
      %s421 = int_to_ptr.hbm [resolvable:$true] %s420
      %423 = dma.vmem_to_hbm [thread:$0]  %s419, 128, %s421, [#allocation8]
    $region37: #{tpu_custom_call.1} parent=1 // pred_fallthru
      _
    // Predicated region
    $region38: #{tpu_custom_call.1} parent=1 // pred_check
      _
    $region39: #{tpu_custom_call.1} parent=1 // pred_check_branch
      %425 = sbr.rel (0) target = $region41
    $region40: #{tpu_custom_call.1} parent=1 // pred_region
      %427 = dma.done [#allocation8], 128
    $region41: #{tpu_custom_call.1} parent=1 // pred_fallthru
      _
    %428 = vsyncpa [#allocation7], 1
    %429 = vsyncpa [#allocation10], 1
    %430 = vsyncpa [#allocation8], 1

</llo_original>
